<compile_context>
chip_gen: v7x
topology: tpu7x:2x2x1
jax: 0.10.0
libtpu: 0.0.40
codegen_flags: <defaults>
</compile_context>

<pallas_src>
import functools

import jax
import jax.numpy as jnp
from jax import lax
from jax.experimental import pallas as pl
from jax.experimental.pallas import tpu as pltpu

_LANE = 128
_TARGET_BLOCK_BYTES = 4 * 1024 * 1024   # per-input DMA block size target
_CHUNK_TARGET_ROWS = 512                # in-kernel compute chunk (rows)
_ACC_ROWS_TARGET = 32                   # wide accumulator (breaks vadd dep chain)


def _round_up(x, m):
    return ((x + m - 1) // m) * m


def _min_sublane(dtype):
    return {4: 8, 2: 16, 1: 32}.get(jnp.dtype(dtype).itemsize, 8)


def _default_num_splits():
    # 2 TensorCores per chip on v7x-class parts; 1 on v5e / v6e.
    try:
        kind = jax.devices()[0].device_kind.lower()
    except Exception:
        return 1
    return 2 if ("v7" in kind or "7x" in kind) else 1


def _mae_kernel(
    yt_ref,
    yp_ref,
    out_ref,
    acc_ref,
    *,
    tile_rows,
    chunk_rows,
    acc_rows,
    rows_total,
    blocks_per_split,
    nblocks,
    ragged_last_block,
    overshoot,
):
    s = pl.program_id(0)
    k = pl.program_id(1)
    g = s * blocks_per_split + k  # unclamped global block id

    @pl.when(k == 0)
    def _():
        acc_ref[...] = jnp.zeros_like(acc_ref)

    n_chunks = tile_rows // chunk_rows

    def accumulate(masked):
        def body(c, carry):
            r0 = pl.multiple_of(c * chunk_rows, chunk_rows)
            yt = yt_ref[pl.ds(r0, chunk_rows), :].astype(jnp.float32)
            yp = yp_ref[pl.ds(r0, chunk_rows), :].astype(jnp.float32)
            d = jnp.abs(yt - yp)
            if masked:
                # Row-only mask (lane tail is handled in the wrapper); indices
                # are in rows, so no int32 overflow even for huge tensors.
                row_ids = lax.broadcasted_iota(jnp.int32, (chunk_rows, _LANE), 0)
                global_rows = g * tile_rows + r0 + row_ids
                d = jnp.where(global_rows < rows_total, d, 0.0)
            # VPU-only accumulation onto the wide accumulator; the single
            # cross-lane reduce happens once in the epilogue.
            acc_ref[...] += d.reshape(-1, acc_rows, _LANE).sum(axis=0)
            return carry

        lax.fori_loop(0, n_chunks, body, 0, unroll=True)

    def dispatch():
        if ragged_last_block:
            @pl.when(g == nblocks - 1)
            def _():
                accumulate(masked=True)

            @pl.when(g != nblocks - 1)
            def _():
                accumulate(masked=False)
        else:
            accumulate(masked=False)

    if overshoot:
        # Only compiled in when num_splits does not divide nblocks: the few
        # overshoot steps are clamped to the last block by the index_map and
        # skipped here (no wrong accumulation).
        @pl.when(g < nblocks)
        def _():
            dispatch()
    else:
        dispatch()

    @pl.when(k == pl.num_programs(1) - 1)
    def _():
        out_ref[0, 0] = jnp.sum(acc_ref[...])


def mae_accuracy_loss(y_true, y_pred, total_capacity, *, tile_rows=None, num_splits=None):
    assert y_true.shape == y_pred.shape
    n_elem = int(y_true.size)
    if n_elem == 0:
        return jnp.float32(0.0)

    itemsize = max(jnp.dtype(y_true.dtype).itemsize, jnp.dtype(y_pred.dtype).itemsize)
    min_sublane = max(_min_sublane(y_true.dtype), _min_sublane(y_pred.dtype))

    flat_t = y_true.reshape(-1)
    flat_p = y_pred.reshape(-1)

    rows = n_elem // _LANE
    aligned = rows * _LANE
    tail = n_elem - aligned

    # <128-element lane tail: tiny plain-JAX sum (no full-array pad copy).
    tail_sum = jnp.float32(0.0)
    if tail:
        tt = flat_t[aligned:].astype(jnp.float32)
        tp = flat_p[aligned:].astype(jnp.float32)
        tail_sum = jnp.sum(jnp.abs(tt - tp))

    if rows == 0:
        total = tail_sum
    else:
        a = (flat_t[:aligned] if tail else flat_t).reshape(rows, _LANE)
        b = (flat_p[:aligned] if tail else flat_p).reshape(rows, _LANE)

        # --- block / chunk sizing ---------------------------------------
        if tile_rows is None:
            tr = max(min_sublane, _TARGET_BLOCK_BYTES // (_LANE * itemsize))
        else:
            tr = int(tile_rows)
        tr = max(min_sublane, (tr // min_sublane) * min_sublane)
        rows_padded = _round_up(rows, min_sublane)
        tr = min(tr, rows_padded)
        if tr > _CHUNK_TARGET_ROWS:
            chunk_rows = _CHUNK_TARGET_ROWS
            tr = _round_up(tr, _CHUNK_TARGET_ROWS)
        else:
            chunk_rows = tr
        acc_rows = _ACC_ROWS_TARGET if chunk_rows % _ACC_ROWS_TARGET == 0 else min_sublane

        nblocks = pl.cdiv(rows, tr)
        ns = _default_num_splits() if num_splits is None else int(num_splits)
        ns = max(1, min(ns, nblocks))
        bps = pl.cdiv(nblocks, ns)

        overshoot = (ns * bps != nblocks)       # only when ns doesn't divide nblocks
        ragged = (rows % tr != 0)               # at most the globally last block

        if overshoot:
            def in_index(s, k):
                return (jnp.minimum(s * bps + k, nblocks - 1), 0)
        else:
            def in_index(s, k):
                return (s * bps + k, 0)

        kernel = functools.partial(
            _mae_kernel,
            tile_rows=tr,
            chunk_rows=chunk_rows,
            acc_rows=acc_rows,
            rows_total=rows,
            blocks_per_split=bps,
            nblocks=nblocks,
            ragged_last_block=ragged,
            overshoot=overshoot,
        )

        cost = pl.CostEstimate(
            flops=3 * n_elem,
            transcendentals=0,
            bytes_accessed=2 * n_elem * itemsize + ns * 4,
        )

        partials = pl.pallas_call(
            kernel,
            out_shape=jax.ShapeDtypeStruct((ns, 1), jnp.float32),
            grid=(ns, bps),
            in_specs=[
                pl.BlockSpec((tr, _LANE), in_index),
                pl.BlockSpec((tr, _LANE), in_index),
            ],
            out_specs=pl.BlockSpec((1, 1), lambda s, k: (s, 0), memory_space=pltpu.SMEM),
            scratch_shapes=[pltpu.VMEM((acc_rows, _LANE), jnp.float32)],
            compiler_params=pltpu.CompilerParams(
                dimension_semantics=("parallel", "arbitrary"),
                # 2 inputs x 2 pipeline buffers x ~4 MiB blocks + chunk temporaries
                # ~= 18 MiB: exceeds v5e's 16 MiB scoped default, well under v7x's
                # 64 MiB physical.
                vmem_limit_bytes=32 * 1024 * 1024,
            ),
            cost_estimate=cost,
        )(a, b)

        total = jnp.sum(partials) + tail_sum

    return total / (jnp.float32(n_elem) * jnp.float32(total_capacity))


if __name__ == "__main__":
    # Deterministic small inputs consistent with the module's forward
    # (any equal-shaped y_true / y_pred; pick NCHW 2x4x16x16).
    total_capacity = 100.0
    key = jax.random.PRNGKey(0)
    k1, k2 = jax.random.split(key)
    y_true = jax.random.uniform(k1, (2, 4, 16, 16), dtype=jnp.float32)
    y_pred = jax.random.uniform(k2, (2, 4, 16, 16), dtype=jnp.float32)

    loss = mae_accuracy_loss(y_true, y_pred, total_capacity)
    loss = jax.block_until_ready(loss)

    # Reference check (plain JAX).
    ref = jnp.mean(jnp.abs(y_true - y_pred)) / total_capacity
    assert jnp.allclose(loss, ref, rtol=1e-6, atol=1e-8), (loss, ref)

    print("KERNEL_OK")
</pallas_src>

<mosaic_0001>
module attributes {stable_mosaic.version = 11 : i64} {
  func.func @_mae_kernel(%arg0: i32, %arg1: i32, %arg2: memref<16x128xf32, #tpu.memory_space<vmem>>, %arg3: memref<16x128xf32, #tpu.memory_space<vmem>>, %arg4: memref<1x1xf32, #tpu.memory_space<smem>>, %arg5: memref<8x128xf32, #tpu.memory_space<vmem>>) attributes {dimension_semantics = [#tpu.dimension_semantics<parallel>, #tpu.dimension_semantics<arbitrary>], iteration_bounds = array<i64: 1, 1>, scalar_prefetch = 0 : i64, scratch_operands = 1 : i64, tpu.core_type = #tpu.core_type<tc>, window_params = [{transform_indices = @transform_0, window_bounds = array<i64: 16, 128>}, {transform_indices = @transform_1, window_bounds = array<i64: 16, 128>}, {transform_indices = @transform_2, window_bounds = array<i64: 1, 1>}]} {
    %c0_i32 = arith.constant 0 : i32
    %0 = arith.cmpi eq, %arg1, %c0_i32 : i32
    %1 = arith.extui %0 : i1 to i32
    %c0_i32_0 = arith.constant 0 : i32
    %2 = arith.cmpi ne, %1, %c0_i32_0 : i32
    scf.if %2 {
      %cst_9 = arith.constant 0.000000e+00 : f32
      %19 = vector.broadcast %cst_9 : f32 to vector<8x128xf32>
      %c0_10 = arith.constant 0 : index
      %c0_11 = arith.constant 0 : index
      %20 = vector.load %arg5[%c0_10, %c0_11] : memref<8x128xf32, #tpu.memory_space<vmem>>, vector<8x128xf32>
      tpu.vector_store %arg5[%c0_10, %c0_11], %19 {strides = array<i32>} : memref<8x128xf32, #tpu.memory_space<vmem>>, vector<8x128xf32>,
    } else {
    }
    %c0_i32_1 = arith.constant 0 : i32
    %c16_i32 = arith.constant 16 : i32
    %3 = arith.muli %c0_i32_1, %c16_i32 : i32
    %4 = tpu.assume_multiple %3, 16 : i32
    %5 = arith.index_cast %4 : i32 to index
    %c0 = arith.constant 0 : index
    %6 = vector.load %arg2[%5, %c0] : memref<16x128xf32, #tpu.memory_space<vmem>>, vector<16x128xf32>
    %7 = arith.index_cast %4 : i32 to index
    %c0_2 = arith.constant 0 : index
    %8 = vector.load %arg3[%7, %c0_2] : memref<16x128xf32, #tpu.memory_space<vmem>>, vector<16x128xf32>
    %9 = arith.subf %6, %8 : vector<16x128xf32>
    %10 = math.absf %9 : vector<16x128xf32>
    %c0_3 = arith.constant 0 : index
    %c0_4 = arith.constant 0 : index
    %11 = vector.load %arg5[%c0_3, %c0_4] : memref<8x128xf32, #tpu.memory_space<vmem>>, vector<8x128xf32>
    %12 = vector.shape_cast %10 : vector<16x128xf32> to vector<2x8x128xf32>
    %cst = arith.constant dense<0.000000e+00> : vector<8x128xf32>
    %13 = vector.multi_reduction <add>, %12, %cst [0] : vector<2x8x128xf32> to vector<8x128xf32>
    %14 = arith.addf %11, %13 : vector<8x128xf32>
    %c0_5 = arith.constant 0 : index
    %c0_6 = arith.constant 0 : index
    %15 = vector.load %arg5[%c0_5, %c0_6] : memref<8x128xf32, #tpu.memory_space<vmem>>, vector<8x128xf32>
    tpu.vector_store %arg5[%c0_5, %c0_6], %14 {strides = array<i32>} : memref<8x128xf32, #tpu.memory_space<vmem>>, vector<8x128xf32>,
    %c1_i32 = arith.constant 1 : i32
    %c0_i32_7 = arith.constant 0 : i32
    %16 = arith.cmpi eq, %arg1, %c0_i32_7 : i32
    %17 = arith.extui %16 : i1 to i32
    %c0_i32_8 = arith.constant 0 : i32
    %18 = arith.cmpi ne, %17, %c0_i32_8 : i32
    scf.if %18 {
      %c0_9 = arith.constant 0 : index
      %c0_10 = arith.constant 0 : index
      %19 = vector.load %arg5[%c0_9, %c0_10] : memref<8x128xf32, #tpu.memory_space<vmem>>, vector<8x128xf32>
      %20 = vector.shape_cast %19 : vector<8x128xf32> to vector<1x8x128xf32>
      %cst_11 = arith.constant dense<0.000000e+00> : vector<1xf32>
      %21 = vector.multi_reduction <add>, %20, %cst_11 [1, 2] : vector<1x8x128xf32> to vector<1xf32>
      %22 = vector.shape_cast %21 : vector<1xf32> to vector<1x1x1xf32>
      %23 = vector.extract %22[0, 0, 0] : f32 from vector<1x1x1xf32>
      %c0_12 = arith.constant 0 : index
      %c0_13 = arith.constant 0 : index
      %24 = memref.load %arg4[%c0_12, %c0_13] : memref<1x1xf32, #tpu.memory_space<smem>>
      memref.store %23, %arg4[%c0_12, %c0_13] : memref<1x1xf32, #tpu.memory_space<smem>>
    } else {
    }
    return
  }
  func.func @transform_0(%arg0: i32, %arg1: i32) -> (i32, i32) {
    %c1_i32 = arith.constant 1 : i32
    %0 = arith.muli %arg0, %c1_i32 : i32
    %1 = arith.addi %0, %arg1 : i32
    %c0_i32 = arith.constant 0 : i32
    %c0_i32_0 = arith.constant 0 : i32
    return %1, %c0_i32 : i32, i32
  }
  func.func @transform_1(%arg0: i32, %arg1: i32) -> (i32, i32) {
    %c1_i32 = arith.constant 1 : i32
    %0 = arith.muli %arg0, %c1_i32 : i32
    %1 = arith.addi %0, %arg1 : i32
    %c0_i32 = arith.constant 0 : i32
    %c0_i32_0 = arith.constant 0 : i32
    return %1, %c0_i32 : i32, i32
  }
  func.func @transform_2(%arg0: i32, %arg1: i32) -> (i32, i32) {
    %c0_i32 = arith.constant 0 : i32
    %c0_i32_0 = arith.constant 0 : i32
    return %arg0, %c0_i32 : i32, i32
  }
}

</mosaic_0001>

<llo_original>
// kernel: tpu_custom_call.1
$region0: #{tpu_custom_call.1}
  #allocation0 [shape = 'u32[]', space=smem, size = 0x4, offset = 0x4, fixed_abs, tag = 'smem constant byte address 0x4 - core index']
  #allocation1 [shape = 'u32[144,128]{1,0:T(1,128)}', space=vmem, size = 0x12000, scoped, tag = 'internal scratch']
  #allocation2 [shape = 'f32[8,128]{1,0:T(8,128)}', space=vmem, size = 0x1000, scoped, tag = 'scratch operand']
  %s0 = inlined_call_operand.hbm [shape: f32[16,128], index: 0, kind: input, shape index: {}]
  %s1 = inlined_call_operand.hbm [shape: f32[16,128], index: 1, kind: input, shape index: {}]
  %s2 = inlined_call_operand.hbm [shape: f32[1,1], index: 2, kind: output, shape index: {}]
  %s3 = sld [smem:[#allocation0]]
  $region34: #{tpu_custom_call.1} parent=0
    _
  %s5 = ssub.s32 1, %s3
  %s6 = scalar_select 0, %s5, %s3
  $region1: #{tpu_custom_call.1} parent=0
    #allocation3 [shape = 'u8[8192]{0}', space=vmem, size = 0x2000, scoped, tag = 'input window, operand 0, single buffered']
    #allocation4 [shape = 's32[1]{0}', space=sflag, size = 0x4, scoped, tag = 'scoped memory for tpu_custom_call.1']
    #allocation5 [shape = 's32[1]{0}', space=sflag, size = 0x4, scoped, tag = 'scoped memory for tpu_custom_call.1']
    #allocation6 [shape = 'u8[8192]{0}', space=vmem, size = 0x2000, scoped, tag = 'input window, operand 1, single buffered']
    #allocation7 [shape = 's32[1]{0}', space=sflag, size = 0x4, scoped, tag = 'scoped memory for tpu_custom_call.1']
    #allocation8 [shape = 'u8[512]{0}', space=smem, size = 0x200, scoped, tag = 'output window, operand 0, single buffered']
    %7 = vsyncpa [#allocation4], 0
    %8 = vsyncpa [#allocation7], 0
    %9 = vsyncpa [#allocation5], 0
    // Predicated region
    $region2: #{tpu_custom_call.1} parent=1 // pred_check
      _
    $region3: #{tpu_custom_call.1} parent=1 // pred_check_branch
      %11 = sbr.rel (0) target = $region5
    $region4: #{tpu_custom_call.1} parent=1 // pred_region
      %s12 = sadd.s32 0, 0
      %s13 = smul.u32 2, %s12
      %s15 = ssub.s32 256, 256
      %16 = vsyncadd [#allocation4], %s15
      %s17 = smul.addr %s13, 128
      %s18 = scalar_lea.hbm %s0, %s17
      %s19 = sshll.u32 [#allocation3], 4
      %s20 = int_to_ptr.vmem [resolvable:$true] %s19
      %25 = dma.hbm_to_vmem [thread:$0]  %s18, 256, %s20, [#allocation4], 128, 128, 8
    $region5: #{tpu_custom_call.1} parent=1 // pred_fallthru
      _
    // Predicated region
    $region6: #{tpu_custom_call.1} parent=1 // pred_check
      _
    $region7: #{tpu_custom_call.1} parent=1 // pred_check_branch
      %27 = sbr.rel (0) target = $region9
    $region8: #{tpu_custom_call.1} parent=1 // pred_region
      %s28 = sadd.s32 0, 0
      %s29 = smul.u32 2, %s28
      %s31 = ssub.s32 256, 256
      %32 = vsyncadd [#allocation7], %s31
      %s33 = smul.addr %s29, 128
      %s34 = scalar_lea.hbm %s1, %s33
      %s35 = sshll.u32 [#allocation6], 4
      %s36 = int_to_ptr.vmem [resolvable:$true] %s35
      %41 = dma.hbm_to_vmem [thread:$0]  %s34, 256, %s36, [#allocation7], 128, 128, 8
    $region9: #{tpu_custom_call.1} parent=1 // pred_fallthru
      _
    // Predicated region
    $region10: #{tpu_custom_call.1} parent=1 // pred_check
      _
    $region11: #{tpu_custom_call.1} parent=1 // pred_check_branch
      %43 = sbr.rel (0) target = $region13
    $region12: #{tpu_custom_call.1} parent=1 // pred_region
      %44 = dma.done [#allocation4], 256
    $region13: #{tpu_custom_call.1} parent=1 // pred_fallthru
      _
    // Predicated region
    $region14: #{tpu_custom_call.1} parent=1 // pred_check
      _
    $region15: #{tpu_custom_call.1} parent=1 // pred_check_branch
      %46 = sbr.rel (0) target = $region17
    $region16: #{tpu_custom_call.1} parent=1 // pred_region
      %47 = dma.done [#allocation7], 256
    $region17: #{tpu_custom_call.1} parent=1 // pred_fallthru
      _
    %s48 = sadd.s32 0, 0
    %s49 = smul.u32 2, %s48
    %s50 = sadd.s32 0, 0
    %s51 = smul.u32 2, %s50
    %p52 = scmp.eq.s32.totalorder 0, 0
    // Predicated region
    $region18: #{tpu_custom_call.1} parent=1 // pred_check
      %p53 = pneg %p52
    $region19: #{tpu_custom_call.1} parent=1 // pred_check_branch
      %55 = sbr.rel (%p53) target = $region21
    $region20: #{tpu_custom_call.1} parent=1 // pred_region
      %56 = vst [vmem:[#allocation2] sm:$0xff] 0.0
    $region21: #{tpu_custom_call.1} parent=1 // pred_fallthru
      _
    %v57 = vld [vmem:[#allocation3] sm:$0xff]
    %v58 = vld [vmem:[#allocation3 + $0x8] sm:$0xff]
    %v59 = vld [vmem:[#allocation6] sm:$0xff]
    %v60 = vld [vmem:[#allocation6 + $0x8] sm:$0xff]
    %v61 = vsub.f32 %v57, %v59
    %v62 = vsub.f32 %v58, %v60
    %v63 = vand.u32 2147483647, %v61
    %v64 = vand.u32 2147483647, %v62
    %v65 = vld [vmem:[#allocation2] sm:$0xff]
    %v66 = vadd.f32 %v63, %v64
    %v67 = vadd.f32 %v65, %v66
    %68 = vst [vmem:[#allocation2] sm:$0xff] %v67
    // Predicated region
    $region22: #{tpu_custom_call.1} parent=1 // pred_check
      %p69 = pneg %p52
    $region23: #{tpu_custom_call.1} parent=1 // pred_check_branch
      %71 = sbr.rel (%p69) target = $region25
    $region24: #{tpu_custom_call.1} parent=1 // pred_region
      %v72 = vld [vmem:[#allocation2] sm:$0xff]
      %73 = vadd.xlane.f32.xlu0 %v72
      %v74 = vpop.xlane.xlu0 %73
      %v75 = vrot.slane %v74, 4
      %v76 = vadd.f32 %v74, %v75
      %v77 = vrot.slane %v76, 2
      %v78 = vadd.f32 %v76, %v77
      %v79 = vrot.slane %v78, 1
      %v80 = vadd.f32 %v78, %v79
      %s81 = vtos %v80
      %s82 = scalar_lea.smem [#allocation8], 0
      %83 = sst [smem:[%s82]] %s81
    $region25: #{tpu_custom_call.1} parent=1 // pred_fallthru
      _
    // Predicated region
    $region26: #{tpu_custom_call.1} parent=1 // pred_check
      _
    $region27: #{tpu_custom_call.1} parent=1 // pred_check_branch
      %85 = sbr.rel (0) target = $region29
    $region28: #{tpu_custom_call.1} parent=1 // pred_region
      %s87 = ssub.s32 16, 16
      %88 = vsyncadd [#allocation5], %s87
      %91 = dma.smem_to_hbm [#allocation8], 16, %s2, [#allocation5]
    $region29: #{tpu_custom_call.1} parent=1 // pred_fallthru
      _
    // Predicated region
    $region30: #{tpu_custom_call.1} parent=1 // pred_check
      _
    $region31: #{tpu_custom_call.1} parent=1 // pred_check_branch
      %93 = sbr.rel (0) target = $region33
    $region32: #{tpu_custom_call.1} parent=1 // pred_region
      %94 = dma.done [#allocation5], 16
    $region33: #{tpu_custom_call.1} parent=1 // pred_fallthru
      _
    %95 = sfence
    %96 = vsyncpa [#allocation4], 1
    %97 = vsyncpa [#allocation7], 1
    %98 = vsyncpa [#allocation5], 1

</llo_original>
